<compile_context>
chip_gen: v5e
topology: v5e:2x2
jax: 0.10.0
libtpu: 0.0.40
codegen_flags: <defaults>
</compile_context>

<pallas_src>
import functools
import math

import jax
import jax.numpy as jnp
from jax import lax
from jax.experimental import pallas as pl
from jax.experimental.pallas import tpu as pltpu

BN_EPS = 1e-5
LEAKY_SLOPE = 0.2
LANES = 128          # TPU lane width; hidden/output features are padded to this
N_HIDDEN_LAYERS = 4  # Linear+BN+LeakyReLU blocks before the final Linear


def _round_up(x, m):
    return (x + m - 1) // m * m


def _qnet_kernel(x_ref, w_ref, v_ref, o_ref, *, d_pad, inv_b):
    """Fused 5-layer MLP forward.

    x_ref : (B, d_pad)        input, zero-padded columns beyond inp_dim^2
    w_ref : (d_pad + 4*128, 128) packed weights (each layer a sublane-aligned slab)
    v_ref : (16, 128)         rows 0..4 = biases, 5..8 = gammas, 9..12 = betas
    o_ref : (B, 128)          lane-dense output slab (Q-values in first lanes)
    """
    # Static, sublane-aligned row offsets of each weight slab.
    w_offs = [0, d_pad, d_pad + LANES, d_pad + 2 * LANES, d_pad + 3 * LANES]
    w_rows = [d_pad, LANES, LANES, LANES, LANES]

    def wmat(li):
        o, n = w_offs[li], w_rows[li]
        return w_ref[o:o + n, :]                       # static (n, 128) slice

    def vrow(r):
        return v_ref[r:r + 1, :]                       # static (1, 128) slice

    def linear(h, li):
        # h @ W + b  (padded lanes/rows are zero, so padding is inert)
        return jnp.dot(h, wmat(li), preferred_element_type=jnp.float32) + vrow(li)

    def bn_leaky(h, li):
        # Fused training-mode BatchNorm1d (biased batch variance) + LeakyReLU.
        s1 = jnp.sum(h, axis=0, keepdims=True)         # (1, 128)
        s2 = jnp.sum(h * h, axis=0, keepdims=True)     # (1, 128)  (independent reduces)
        mean = s1 * inv_b
        var = s2 * inv_b - mean * mean
        scale = vrow(5 + li) * lax.rsqrt(var + BN_EPS)  # gamma * rsqrt(var+eps)
        shift = vrow(9 + li) - mean * scale             # beta  - mean*scale
        h = h * scale + shift                           # single FMA apply
        return jnp.where(h > 0, h, LEAKY_SLOPE * h)

    h = x_ref[...].astype(jnp.float32)
    for li in range(N_HIDDEN_LAYERS):
        h = bn_leaky(linear(h, li), li)
    o_ref[...] = linear(h, N_HIDDEN_LAYERS).astype(o_ref.dtype)


def init_qnetwork_params(key, inp_dim, outp_dim, nodes_per_layer):
    """Deterministic params mimicking PyTorch default inits.

    Linear: U(-1/sqrt(fan_in), 1/sqrt(fan_in)) for weight and bias.
    BatchNorm1d: gamma=1, beta=0.
    Weights are stored as (in_features, out_features).
    """
    dims = [inp_dim * inp_dim] + [nodes_per_layer] * N_HIDDEN_LAYERS + [outp_dim]
    params = []
    for li in range(N_HIDDEN_LAYERS + 1):
        fan_in, fan_out = dims[li], dims[li + 1]
        key, kw, kb = jax.random.split(key, 3)
        bound = 1.0 / math.sqrt(fan_in)
        w = jax.random.uniform(kw, (fan_in, fan_out), jnp.float32, -bound, bound)
        b = jax.random.uniform(kb, (fan_out,), jnp.float32, -bound, bound)
        params.append((w, b))
    bn_params = []
    for _ in range(N_HIDDEN_LAYERS):
        gamma = jnp.ones((nodes_per_layer,), jnp.float32)
        beta = jnp.zeros((nodes_per_layer,), jnp.float32)
        bn_params.append((gamma, beta))
    return params, bn_params


def _pack_operands(x2d, params, bn_params):
    """Pack input + all parameters into 3 lane-aligned operands."""
    B, d_in = x2d.shape
    d_pad = _round_up(d_in, 8)

    # Input: pad feature columns to a sublane multiple (zeros are inert).
    x_pad = jnp.zeros((B, d_pad), jnp.float32).at[:, :d_in].set(x2d)

    # Weights: one (d_pad + 4*128, 128) slab; each layer's matrix sits in a
    # sublane-aligned row range, valid output features in the first lanes.
    w_offs = [0, d_pad, d_pad + LANES, d_pad + 2 * LANES, d_pad + 3 * LANES]
    w_pack = jnp.zeros((d_pad + 4 * LANES, LANES), jnp.float32)
    for li, (w, _) in enumerate(params):
        fi, fo = w.shape
        assert fi <= (d_pad if li == 0 else LANES) and fo <= LANES
        w_pack = w_pack.at[w_offs[li]:w_offs[li] + fi, :fo].set(w)

    # Vectors: biases (rows 0..4), gammas (5..8), betas (9..12), zero pad to 16.
    v_pack = jnp.zeros((16, LANES), jnp.float32)
    for li, (_, b) in enumerate(params):
        v_pack = v_pack.at[li, :b.shape[0]].set(b)
    for li, (g, t) in enumerate(bn_params):
        v_pack = v_pack.at[5 + li, :g.shape[0]].set(g)
        v_pack = v_pack.at[9 + li, :t.shape[0]].set(t)

    return x_pad, w_pack, v_pack, d_pad


def qnetwork_forward(x, params, bn_params, inp_dim, outp_dim):
    """x: (B, inp_dim, inp_dim) or (B, inp_dim*inp_dim). Returns (B, outp_dim)."""
    B = x.shape[0]
    D = inp_dim * inp_dim
    x2d = x.reshape(B, D).astype(jnp.float32)  # == x.view(-1, inp_dim*inp_dim)

    x_pad, w_pack, v_pack, d_pad = _pack_operands(x2d, params, bn_params)

    out_padded = pl.pallas_call(
        functools.partial(_qnet_kernel, d_pad=d_pad, inv_b=1.0 / B),
        out_shape=jax.ShapeDtypeStruct((B, LANES), jnp.float32),
        grid=(1,),
        in_specs=[
            pl.BlockSpec(x_pad.shape, lambda i: (0, 0)),
            pl.BlockSpec(w_pack.shape, lambda i: (0, 0)),
            pl.BlockSpec(v_pack.shape, lambda i: (0, 0)),
        ],
        out_specs=pl.BlockSpec((B, LANES), lambda i: (0, 0)),
        compiler_params=pltpu.CompilerParams(
            dimension_semantics=("arbitrary",),
        ),
    )(x_pad, w_pack, v_pack)

    return out_padded[:, :outp_dim]


def _reference_forward(x, params, bn_params, inp_dim):
    """Pure-JAX reference (PyTorch-faithful form) for the sanity check."""
    B = x.shape[0]
    h = x.reshape(B, inp_dim * inp_dim).astype(jnp.float32)
    for li in range(N_HIDDEN_LAYERS):
        w, b = params[li]
        g, t = bn_params[li]
        h = h @ w + b
        mean = jnp.mean(h, axis=0, keepdims=True)
        var = jnp.mean((h - mean) ** 2, axis=0, keepdims=True)
        h = g * (h - mean) * jax.lax.rsqrt(var + BN_EPS) + t
        h = jnp.where(h > 0, h, LEAKY_SLOPE * h)
    w, b = params[N_HIDDEN_LAYERS]
    return h @ w + b


if __name__ == "__main__":
    inp_dim = 4          # Snake board of 4x4 -> 16 input features
    outp_dim = 4         # 4 actions
    nodes_per_layer = 32
    batch = 8            # BatchNorm1d (training mode) needs batch > 1

    key = jax.random.PRNGKey(0)
    key, kx = jax.random.split(key)
    x = jax.random.normal(kx, (batch, inp_dim, inp_dim), jnp.float32)

    params, bn_params = init_qnetwork_params(key, inp_dim, outp_dim, nodes_per_layer)

    out = qnetwork_forward(x, params, bn_params, inp_dim, outp_dim)
    out = jax.block_until_ready(out)

    ref = _reference_forward(x, params, bn_params, inp_dim)
    assert out.shape == (batch, outp_dim)
    assert jnp.allclose(out, ref, atol=1e-4, rtol=1e-4), "mismatch vs reference"

    print("KERNEL_OK")
</pallas_src>

<mosaic_0001>
module attributes {stable_mosaic.version = 11 : i64} {
  func.func @_qnet_kernel(%arg0: i32, %arg1: memref<8x16xf32, #tpu.memory_space<vmem>>, %arg2: memref<528x128xf32, #tpu.memory_space<vmem>>, %arg3: memref<16x128xf32, #tpu.memory_space<vmem>>, %arg4: memref<8x128xf32, #tpu.memory_space<vmem>>) attributes {dimension_semantics = [#tpu.dimension_semantics<arbitrary>], iteration_bounds = array<i64: 1>, scalar_prefetch = 0 : i64, scratch_operands = 0 : i64, tpu.core_type = #tpu.core_type<tc>, window_params = [{pipeline_mode = #tpu.pipeline_mode<synchronous>, transform_indices = @transform_0, window_bounds = array<i64: 8, 16>}, {pipeline_mode = #tpu.pipeline_mode<synchronous>, transform_indices = @transform_1, window_bounds = array<i64: 528, 128>}, {pipeline_mode = #tpu.pipeline_mode<synchronous>, transform_indices = @transform_2, window_bounds = array<i64: 16, 128>}, {pipeline_mode = #tpu.pipeline_mode<synchronous>, transform_indices = @transform_3, window_bounds = array<i64: 8, 128>}]} {
    %c0 = arith.constant 0 : index
    %c0_0 = arith.constant 0 : index
    %0 = vector.load %arg1[%c0, %c0_0] : memref<8x16xf32, #tpu.memory_space<vmem>>, vector<8x16xf32>
    %c0_1 = arith.constant 0 : index
    %c0_2 = arith.constant 0 : index
    %1 = vector.load %arg2[%c0_1, %c0_2] : memref<528x128xf32, #tpu.memory_space<vmem>>, vector<16x128xf32>
    %cst = arith.constant dense<0.000000e+00> : vector<8x128xf32>
    %2 = tpu.matmul %0, %1, %cst {dimension_numbers = #tpu.dot_dimension_numbers<[1], [0], [0], [1], [0, 0, 1, 1], [], []>} : vector<8x16xf32>, vector<16x128xf32>, vector<8x128xf32> -> vector<8x128xf32>
    %c0_3 = arith.constant 0 : index
    %c0_4 = arith.constant 0 : index
    %3 = vector.load %arg3[%c0_3, %c0_4] : memref<16x128xf32, #tpu.memory_space<vmem>>, vector<1x128xf32>
    %4 = vector.broadcast %3 : vector<1x128xf32> to vector<8x128xf32>
    %5 = arith.addf %2, %4 : vector<8x128xf32>
    %cst_5 = arith.constant dense<0.000000e+00> : vector<128xf32>
    %6 = vector.multi_reduction <add>, %5, %cst_5 [0] : vector<8x128xf32> to vector<128xf32>
    %7 = vector.shape_cast %6 : vector<128xf32> to vector<1x128xf32>
    %8 = arith.mulf %5, %5 : vector<8x128xf32>
    %cst_6 = arith.constant dense<0.000000e+00> : vector<128xf32>
    %9 = vector.multi_reduction <add>, %8, %cst_6 [0] : vector<8x128xf32> to vector<128xf32>
    %10 = vector.shape_cast %9 : vector<128xf32> to vector<1x128xf32>
    %cst_7 = arith.constant 1.250000e-01 : f32
    %11 = vector.broadcast %cst_7 : f32 to vector<1x128xf32>
    %12 = arith.mulf %7, %11 : vector<1x128xf32>
    %cst_8 = arith.constant 1.250000e-01 : f32
    %13 = vector.broadcast %cst_8 : f32 to vector<1x128xf32>
    %14 = arith.mulf %10, %13 : vector<1x128xf32>
    %15 = arith.mulf %12, %12 : vector<1x128xf32>
    %16 = arith.subf %14, %15 : vector<1x128xf32>
    %c5 = arith.constant 5 : index
    %c0_9 = arith.constant 0 : index
    %17 = vector.load %arg3[%c5, %c0_9] : memref<16x128xf32, #tpu.memory_space<vmem>>, vector<1x128xf32>
    %cst_10 = arith.constant 9.99999974E-6 : f32
    %18 = vector.broadcast %cst_10 : f32 to vector<1x128xf32>
    %19 = arith.addf %16, %18 : vector<1x128xf32>
    %20 = math.rsqrt %19 : vector<1x128xf32>
    %21 = arith.mulf %17, %20 : vector<1x128xf32>
    %c9 = arith.constant 9 : index
    %c0_11 = arith.constant 0 : index
    %22 = vector.load %arg3[%c9, %c0_11] : memref<16x128xf32, #tpu.memory_space<vmem>>, vector<1x128xf32>
    %23 = arith.mulf %12, %21 : vector<1x128xf32>
    %24 = arith.subf %22, %23 : vector<1x128xf32>
    %25 = vector.broadcast %21 : vector<1x128xf32> to vector<8x128xf32>
    %26 = arith.mulf %5, %25 : vector<8x128xf32>
    %27 = vector.broadcast %24 : vector<1x128xf32> to vector<8x128xf32>
    %28 = arith.addf %26, %27 : vector<8x128xf32>
    %cst_12 = arith.constant 0.000000e+00 : f32
    %29 = vector.broadcast %cst_12 : f32 to vector<8x128xf32>
    %30 = arith.cmpf ogt, %28, %29 : vector<8x128xf32>
    %cst_13 = arith.constant 2.000000e-01 : f32
    %31 = vector.broadcast %cst_13 : f32 to vector<8x128xf32>
    %32 = arith.mulf %31, %28 : vector<8x128xf32>
    %33 = arith.select %30, %28, %32 : vector<8x128xi1>, vector<8x128xf32>
    %c16 = arith.constant 16 : index
    %c0_14 = arith.constant 0 : index
    %34 = vector.load %arg2[%c16, %c0_14] : memref<528x128xf32, #tpu.memory_space<vmem>>, vector<128x128xf32>
    %cst_15 = arith.constant dense<0.000000e+00> : vector<8x128xf32>
    %35 = tpu.matmul %33, %34, %cst_15 {dimension_numbers = #tpu.dot_dimension_numbers<[1], [0], [0], [1], [0, 0, 1, 1], [], []>} : vector<8x128xf32>, vector<128x128xf32>, vector<8x128xf32> -> vector<8x128xf32>
    %c1 = arith.constant 1 : index
    %c0_16 = arith.constant 0 : index
    %36 = vector.load %arg3[%c1, %c0_16] : memref<16x128xf32, #tpu.memory_space<vmem>>, vector<1x128xf32>
    %37 = vector.broadcast %36 : vector<1x128xf32> to vector<8x128xf32>
    %38 = arith.addf %35, %37 : vector<8x128xf32>
    %cst_17 = arith.constant dense<0.000000e+00> : vector<128xf32>
    %39 = vector.multi_reduction <add>, %38, %cst_17 [0] : vector<8x128xf32> to vector<128xf32>
    %40 = vector.shape_cast %39 : vector<128xf32> to vector<1x128xf32>
    %41 = arith.mulf %38, %38 : vector<8x128xf32>
    %cst_18 = arith.constant dense<0.000000e+00> : vector<128xf32>
    %42 = vector.multi_reduction <add>, %41, %cst_18 [0] : vector<8x128xf32> to vector<128xf32>
    %43 = vector.shape_cast %42 : vector<128xf32> to vector<1x128xf32>
    %cst_19 = arith.constant 1.250000e-01 : f32
    %44 = vector.broadcast %cst_19 : f32 to vector<1x128xf32>
    %45 = arith.mulf %40, %44 : vector<1x128xf32>
    %cst_20 = arith.constant 1.250000e-01 : f32
    %46 = vector.broadcast %cst_20 : f32 to vector<1x128xf32>
    %47 = arith.mulf %43, %46 : vector<1x128xf32>
    %48 = arith.mulf %45, %45 : vector<1x128xf32>
    %49 = arith.subf %47, %48 : vector<1x128xf32>
    %c6 = arith.constant 6 : index
    %c0_21 = arith.constant 0 : index
    %50 = vector.load %arg3[%c6, %c0_21] : memref<16x128xf32, #tpu.memory_space<vmem>>, vector<1x128xf32>
    %cst_22 = arith.constant 9.99999974E-6 : f32
    %51 = vector.broadcast %cst_22 : f32 to vector<1x128xf32>
    %52 = arith.addf %49, %51 : vector<1x128xf32>
    %53 = math.rsqrt %52 : vector<1x128xf32>
    %54 = arith.mulf %50, %53 : vector<1x128xf32>
    %c10 = arith.constant 10 : index
    %c0_23 = arith.constant 0 : index
    %55 = vector.load %arg3[%c10, %c0_23] : memref<16x128xf32, #tpu.memory_space<vmem>>, vector<1x128xf32>
    %56 = arith.mulf %45, %54 : vector<1x128xf32>
    %57 = arith.subf %55, %56 : vector<1x128xf32>
    %58 = vector.broadcast %54 : vector<1x128xf32> to vector<8x128xf32>
    %59 = arith.mulf %38, %58 : vector<8x128xf32>
    %60 = vector.broadcast %57 : vector<1x128xf32> to vector<8x128xf32>
    %61 = arith.addf %59, %60 : vector<8x128xf32>
    %cst_24 = arith.constant 0.000000e+00 : f32
    %62 = vector.broadcast %cst_24 : f32 to vector<8x128xf32>
    %63 = arith.cmpf ogt, %61, %62 : vector<8x128xf32>
    %cst_25 = arith.constant 2.000000e-01 : f32
    %64 = vector.broadcast %cst_25 : f32 to vector<8x128xf32>
    %65 = arith.mulf %64, %61 : vector<8x128xf32>
    %66 = arith.select %63, %61, %65 : vector<8x128xi1>, vector<8x128xf32>
    %c144 = arith.constant 144 : index
    %c0_26 = arith.constant 0 : index
    %67 = vector.load %arg2[%c144, %c0_26] : memref<528x128xf32, #tpu.memory_space<vmem>>, vector<128x128xf32>
    %cst_27 = arith.constant dense<0.000000e+00> : vector<8x128xf32>
    %68 = tpu.matmul %66, %67, %cst_27 {dimension_numbers = #tpu.dot_dimension_numbers<[1], [0], [0], [1], [0, 0, 1, 1], [], []>} : vector<8x128xf32>, vector<128x128xf32>, vector<8x128xf32> -> vector<8x128xf32>
    %c2 = arith.constant 2 : index
    %c0_28 = arith.constant 0 : index
    %69 = vector.load %arg3[%c2, %c0_28] : memref<16x128xf32, #tpu.memory_space<vmem>>, vector<1x128xf32>
    %70 = vector.broadcast %69 : vector<1x128xf32> to vector<8x128xf32>
    %71 = arith.addf %68, %70 : vector<8x128xf32>
    %cst_29 = arith.constant dense<0.000000e+00> : vector<128xf32>
    %72 = vector.multi_reduction <add>, %71, %cst_29 [0] : vector<8x128xf32> to vector<128xf32>
    %73 = vector.shape_cast %72 : vector<128xf32> to vector<1x128xf32>
    %74 = arith.mulf %71, %71 : vector<8x128xf32>
    %cst_30 = arith.constant dense<0.000000e+00> : vector<128xf32>
    %75 = vector.multi_reduction <add>, %74, %cst_30 [0] : vector<8x128xf32> to vector<128xf32>
    %76 = vector.shape_cast %75 : vector<128xf32> to vector<1x128xf32>
    %cst_31 = arith.constant 1.250000e-01 : f32
    %77 = vector.broadcast %cst_31 : f32 to vector<1x128xf32>
    %78 = arith.mulf %73, %77 : vector<1x128xf32>
    %cst_32 = arith.constant 1.250000e-01 : f32
    %79 = vector.broadcast %cst_32 : f32 to vector<1x128xf32>
    %80 = arith.mulf %76, %79 : vector<1x128xf32>
    %81 = arith.mulf %78, %78 : vector<1x128xf32>
    %82 = arith.subf %80, %81 : vector<1x128xf32>
    %c7 = arith.constant 7 : index
    %c0_33 = arith.constant 0 : index
    %83 = vector.load %arg3[%c7, %c0_33] : memref<16x128xf32, #tpu.memory_space<vmem>>, vector<1x128xf32>
    %cst_34 = arith.constant 9.99999974E-6 : f32
    %84 = vector.broadcast %cst_34 : f32 to vector<1x128xf32>
    %85 = arith.addf %82, %84 : vector<1x128xf32>
    %86 = math.rsqrt %85 : vector<1x128xf32>
    %87 = arith.mulf %83, %86 : vector<1x128xf32>
    %c11 = arith.constant 11 : index
    %c0_35 = arith.constant 0 : index
    %88 = vector.load %arg3[%c11, %c0_35] : memref<16x128xf32, #tpu.memory_space<vmem>>, vector<1x128xf32>
    %89 = arith.mulf %78, %87 : vector<1x128xf32>
    %90 = arith.subf %88, %89 : vector<1x128xf32>
    %91 = vector.broadcast %87 : vector<1x128xf32> to vector<8x128xf32>
    %92 = arith.mulf %71, %91 : vector<8x128xf32>
    %93 = vector.broadcast %90 : vector<1x128xf32> to vector<8x128xf32>
    %94 = arith.addf %92, %93 : vector<8x128xf32>
    %cst_36 = arith.constant 0.000000e+00 : f32
    %95 = vector.broadcast %cst_36 : f32 to vector<8x128xf32>
    %96 = arith.cmpf ogt, %94, %95 : vector<8x128xf32>
    %cst_37 = arith.constant 2.000000e-01 : f32
    %97 = vector.broadcast %cst_37 : f32 to vector<8x128xf32>
    %98 = arith.mulf %97, %94 : vector<8x128xf32>
    %99 = arith.select %96, %94, %98 : vector<8x128xi1>, vector<8x128xf32>
    %c272 = arith.constant 272 : index
    %c0_38 = arith.constant 0 : index
    %100 = vector.load %arg2[%c272, %c0_38] : memref<528x128xf32, #tpu.memory_space<vmem>>, vector<128x128xf32>
    %cst_39 = arith.constant dense<0.000000e+00> : vector<8x128xf32>
    %101 = tpu.matmul %99, %100, %cst_39 {dimension_numbers = #tpu.dot_dimension_numbers<[1], [0], [0], [1], [0, 0, 1, 1], [], []>} : vector<8x128xf32>, vector<128x128xf32>, vector<8x128xf32> -> vector<8x128xf32>
    %c3 = arith.constant 3 : index
    %c0_40 = arith.constant 0 : index
    %102 = vector.load %arg3[%c3, %c0_40] : memref<16x128xf32, #tpu.memory_space<vmem>>, vector<1x128xf32>
    %103 = vector.broadcast %102 : vector<1x128xf32> to vector<8x128xf32>
    %104 = arith.addf %101, %103 : vector<8x128xf32>
    %cst_41 = arith.constant dense<0.000000e+00> : vector<128xf32>
    %105 = vector.multi_reduction <add>, %104, %cst_41 [0] : vector<8x128xf32> to vector<128xf32>
    %106 = vector.shape_cast %105 : vector<128xf32> to vector<1x128xf32>
    %107 = arith.mulf %104, %104 : vector<8x128xf32>
    %cst_42 = arith.constant dense<0.000000e+00> : vector<128xf32>
    %108 = vector.multi_reduction <add>, %107, %cst_42 [0] : vector<8x128xf32> to vector<128xf32>
    %109 = vector.shape_cast %108 : vector<128xf32> to vector<1x128xf32>
    %cst_43 = arith.constant 1.250000e-01 : f32
    %110 = vector.broadcast %cst_43 : f32 to vector<1x128xf32>
    %111 = arith.mulf %106, %110 : vector<1x128xf32>
    %cst_44 = arith.constant 1.250000e-01 : f32
    %112 = vector.broadcast %cst_44 : f32 to vector<1x128xf32>
    %113 = arith.mulf %109, %112 : vector<1x128xf32>
    %114 = arith.mulf %111, %111 : vector<1x128xf32>
    %115 = arith.subf %113, %114 : vector<1x128xf32>
    %c8 = arith.constant 8 : index
    %c0_45 = arith.constant 0 : index
    %116 = vector.load %arg3[%c8, %c0_45] : memref<16x128xf32, #tpu.memory_space<vmem>>, vector<1x128xf32>
    %cst_46 = arith.constant 9.99999974E-6 : f32
    %117 = vector.broadcast %cst_46 : f32 to vector<1x128xf32>
    %118 = arith.addf %115, %117 : vector<1x128xf32>
    %119 = math.rsqrt %118 : vector<1x128xf32>
    %120 = arith.mulf %116, %119 : vector<1x128xf32>
    %c12 = arith.constant 12 : index
    %c0_47 = arith.constant 0 : index
    %121 = vector.load %arg3[%c12, %c0_47] : memref<16x128xf32, #tpu.memory_space<vmem>>, vector<1x128xf32>
    %122 = arith.mulf %111, %120 : vector<1x128xf32>
    %123 = arith.subf %121, %122 : vector<1x128xf32>
    %124 = vector.broadcast %120 : vector<1x128xf32> to vector<8x128xf32>
    %125 = arith.mulf %104, %124 : vector<8x128xf32>
    %126 = vector.broadcast %123 : vector<1x128xf32> to vector<8x128xf32>
    %127 = arith.addf %125, %126 : vector<8x128xf32>
    %cst_48 = arith.constant 0.000000e+00 : f32
    %128 = vector.broadcast %cst_48 : f32 to vector<8x128xf32>
    %129 = arith.cmpf ogt, %127, %128 : vector<8x128xf32>
    %cst_49 = arith.constant 2.000000e-01 : f32
    %130 = vector.broadcast %cst_49 : f32 to vector<8x128xf32>
    %131 = arith.mulf %130, %127 : vector<8x128xf32>
    %132 = arith.select %129, %127, %131 : vector<8x128xi1>, vector<8x128xf32>
    %c400 = arith.constant 400 : index
    %c0_50 = arith.constant 0 : index
    %133 = vector.load %arg2[%c400, %c0_50] : memref<528x128xf32, #tpu.memory_space<vmem>>, vector<128x128xf32>
    %cst_51 = arith.constant dense<0.000000e+00> : vector<8x128xf32>
    %134 = tpu.matmul %132, %133, %cst_51 {dimension_numbers = #tpu.dot_dimension_numbers<[1], [0], [0], [1], [0, 0, 1, 1], [], []>} : vector<8x128xf32>, vector<128x128xf32>, vector<8x128xf32> -> vector<8x128xf32>
    %c4 = arith.constant 4 : index
    %c0_52 = arith.constant 0 : index
    %135 = vector.load %arg3[%c4, %c0_52] : memref<16x128xf32, #tpu.memory_space<vmem>>, vector<1x128xf32>
    %136 = vector.broadcast %135 : vector<1x128xf32> to vector<8x128xf32>
    %137 = arith.addf %134, %136 : vector<8x128xf32>
    %c0_53 = arith.constant 0 : index
    %c0_54 = arith.constant 0 : index
    %138 = vector.load %arg4[%c0_53, %c0_54] : memref<8x128xf32, #tpu.memory_space<vmem>>, vector<8x128xf32>
    tpu.vector_store %arg4[%c0_53, %c0_54], %137 {strides = array<i32>} : memref<8x128xf32, #tpu.memory_space<vmem>>, vector<8x128xf32>,
    return
  }
  func.func @transform_0(%arg0: i32) -> (i32, i32) {
    %c0_i32 = arith.constant 0 : i32
    %c0_i32_0 = arith.constant 0 : i32
    %c0_i32_1 = arith.constant 0 : i32
    return %c0_i32, %c0_i32_0 : i32, i32
  }
  func.func @transform_1(%arg0: i32) -> (i32, i32) {
    %c0_i32 = arith.constant 0 : i32
    %c0_i32_0 = arith.constant 0 : i32
    %c0_i32_1 = arith.constant 0 : i32
    return %c0_i32, %c0_i32_0 : i32, i32
  }
  func.func @transform_2(%arg0: i32) -> (i32, i32) {
    %c0_i32 = arith.constant 0 : i32
    %c0_i32_0 = arith.constant 0 : i32
    %c0_i32_1 = arith.constant 0 : i32
    return %c0_i32, %c0_i32_0 : i32, i32
  }
  func.func @transform_3(%arg0: i32) -> (i32, i32) {
    %c0_i32 = arith.constant 0 : i32
    %c0_i32_0 = arith.constant 0 : i32
    %c0_i32_1 = arith.constant 0 : i32
    return %c0_i32, %c0_i32_0 : i32, i32
  }
}

</mosaic_0001>

<llo_original>
// kernel: tpu_custom_call.1
$region0: #{tpu_custom_call.1}
  #allocation0 [shape = 'u32[]', space=smem, size = 0x4, offset = 0x4, fixed_abs, tag = 'smem constant byte address 0x4 - core index']
  #allocation1 [shape = 'u32[72,128]{1,0:T(1,128)}', space=vmem, size = 0x9000, scoped, tag = 'internal scratch']
  %s0 = inlined_call_operand.hbm [shape: f32[8,16], index: 0, kind: input, shape index: {}]
  %s1 = inlined_call_operand.hbm [shape: f32[528,128], index: 1, kind: input, shape index: {}]
  %s2 = inlined_call_operand.hbm [shape: f32[16,128], index: 2, kind: input, shape index: {}]
  %s3 = inlined_call_operand.hbm [shape: f32[8,128], index: 3, kind: output, shape index: {}]
  %s4 = sld [smem:[#allocation0]]
  $region34: #{tpu_custom_call.1} parent=0
    _
  %s6 = ssub.s32 1, %s4
  %s7 = scalar_select 0, %s6, %s4
  $region1: #{tpu_custom_call.1} parent=0
    #allocation2 [shape = 'u8[4096]{0}', space=vmem, size = 0x1000, scoped, tag = 'input window, operand 0, single buffered']
    #allocation3 [shape = 's32[1]{0}', space=sflag, size = 0x4, scoped, tag = 'scoped memory for tpu_custom_call.1']
    #allocation4 [shape = 's32[1]{0}', space=sflag, size = 0x4, scoped, tag = 'scoped memory for tpu_custom_call.1']
    #allocation5 [shape = 'u8[270336]{0}', space=vmem, size = 0x42000, scoped, tag = 'input window, operand 1, single buffered']
    #allocation6 [shape = 's32[1]{0}', space=sflag, size = 0x4, scoped, tag = 'scoped memory for tpu_custom_call.1']
    #allocation7 [shape = 'u8[8192]{0}', space=vmem, size = 0x2000, scoped, tag = 'input window, operand 2, single buffered']
    #allocation8 [shape = 'u8[4096]{0}', space=vmem, size = 0x1000, scoped, tag = 'output window, operand 0, single buffered']
    %8 = vsyncpa [#allocation3], 0
    %9 = vsyncpa [#allocation6], 0
    %10 = vsyncpa [#allocation4], 0
    // Predicated region
    $region2: #{tpu_custom_call.1} parent=1 // pred_check
      _
    $region3: #{tpu_custom_call.1} parent=1 // pred_check_branch
      %12 = sbr.rel (0) target = $region5
    $region4: #{tpu_custom_call.1} parent=1 // pred_region
      %14 = vsyncadd [#allocation3], 0
      %s16 = sshll.u32 %s0, 4
      %s17 = int_to_ptr.hbm [resolvable:$true] %s16
      %s18 = sshll.u32 [#allocation2], 4
      %s19 = int_to_ptr.vmem [resolvable:$true] %s18
      %21 = dma.hbm_to_vmem [thread:$0]  %s17, 128, %s19, [#allocation3]
    $region5: #{tpu_custom_call.1} parent=1 // pred_fallthru
      _
    // Predicated region
    $region6: #{tpu_custom_call.1} parent=1 // pred_check
      _
    $region7: #{tpu_custom_call.1} parent=1 // pred_check_branch
      %23 = sbr.rel (0) target = $region9
    $region8: #{tpu_custom_call.1} parent=1 // pred_region
      %25 = vsyncadd [#allocation6], 0
      %s26 = sshll.u32 %s1, 4
      %s27 = int_to_ptr.hbm [resolvable:$true] %s26
      %s28 = sshll.u32 [#allocation5], 4
      %s29 = int_to_ptr.vmem [resolvable:$true] %s28
      %34 = dma.hbm_to_vmem [thread:$0]  %s27, 8448, %s29, [#allocation6], 128, 128, 8
    $region9: #{tpu_custom_call.1} parent=1 // pred_fallthru
      _
    // Predicated region
    $region10: #{tpu_custom_call.1} parent=1 // pred_check
      _
    $region11: #{tpu_custom_call.1} parent=1 // pred_check_branch
      %36 = sbr.rel (0) target = $region13
    $region12: #{tpu_custom_call.1} parent=1 // pred_region
      %38 = vsyncadd [#allocation6], 0
      %s39 = sshll.u32 %s2, 4
      %s40 = int_to_ptr.hbm [resolvable:$true] %s39
      %s41 = sshll.u32 [#allocation7], 4
      %s42 = int_to_ptr.vmem [resolvable:$true] %s41
      %47 = dma.hbm_to_vmem [thread:$0]  %s40, 256, %s42, [#allocation6], 128, 128, 8
    $region13: #{tpu_custom_call.1} parent=1 // pred_fallthru
      _
    // Predicated region
    $region14: #{tpu_custom_call.1} parent=1 // pred_check
      _
    $region15: #{tpu_custom_call.1} parent=1 // pred_check_branch
      %49 = sbr.rel (0) target = $region17
    $region16: #{tpu_custom_call.1} parent=1 // pred_region
      %51 = dma.done [#allocation3], 128
    $region17: #{tpu_custom_call.1} parent=1 // pred_fallthru
      _
    // Predicated region
    $region18: #{tpu_custom_call.1} parent=1 // pred_check
      _
    $region19: #{tpu_custom_call.1} parent=1 // pred_check_branch
      %53 = sbr.rel (0) target = $region21
    $region20: #{tpu_custom_call.1} parent=1 // pred_region
      %55 = dma.done [#allocation6], 8448
    $region21: #{tpu_custom_call.1} parent=1 // pred_fallthru
      _
    // Predicated region
    $region22: #{tpu_custom_call.1} parent=1 // pred_check
      _
    $region23: #{tpu_custom_call.1} parent=1 // pred_check_branch
      %57 = sbr.rel (0) target = $region25
    $region24: #{tpu_custom_call.1} parent=1 // pred_region
      %59 = dma.done [#allocation6], 256
    $region25: #{tpu_custom_call.1} parent=1 // pred_fallthru
      _
    %v60 = vld [vmem:[#allocation2] sm:$0xff]
    %v61 = vld [vmem:[#allocation5] sm:$0xff]
    %v62 = vld [vmem:[#allocation5 + $0x8] sm:$0xff]
    %v63 = vld [vmem:[#allocation7] sm:$0x1]
    %v64 = vperm.slane %v63, 0
    %vm65 = vcmask 130048
    %v67 = vsel %vm65, %v60, 0
    %69 = vmatpush.msra.mxu0 0.0
    %70 = vmatpush.msra.mxu0 0.0
    %71 = vmatpush.msra.mxu0 0.0
    %72 = vmatpush.msra.mxu0 0.0
    %73 = vmatpush.msra.mxu0 0.0
    %74 = vmatpush.msra.mxu0 0.0
    %75 = vmatpush.msra.mxu0 0.0
    %76 = vmatpush.msra.mxu0 0.0
    %77 = vmatpush.msra.mxu0 0.0
    %78 = vmatpush.msra.mxu0 0.0
    %79 = vmatpush.msra.mxu0 0.0
    %80 = vmatpush.msra.mxu0 0.0
    %81 = vmatpush.msra.mxu0 0.0
    %82 = vmatpush.msra.mxu0 0.0
    %83 = vmatpush.msra.mxu0 %v62
    %84 = vmatpush.msra.mxu0 %v61
    %85 = vmatmul.f32.gmra.mxu0 %v67
    %v86 = vpop.f32.mrf.mxu0
    %v87 = vadd.f32 %v64, %v86
    %88 = vdwg.mxu0
    %v89 = vrot.slane %v87, 4
    %v90 = vadd.f32 %v87, %v89
    %v91 = vrot.slane %v90, 2
    %v92 = vadd.f32 %v90, %v91
    %v93 = vrot.slane %v92, 1
    %v94 = vadd.f32 %v92, %v93
    %v95 = vmul.f32 %v87, %v87
    %v96 = vrot.slane %v95, 4
    %v97 = vadd.f32 %v95, %v96
    %v98 = vrot.slane %v97, 2
    %v99 = vadd.f32 %v97, %v98
    %v100 = vrot.slane %v99, 1
    %v101 = vadd.f32 %v99, %v100
    %v102 = vmul.f32 %v94, 0.125
    %v103 = vmul.f32 %v101, 0.125
    %v104 = vmul.f32 %v102, %v102
    %v105 = vsub.f32 %v103, %v104
    %v106 = vld [vmem:[#allocation7 + $0x5] sm:$0x1]
    %v107 = vadd.f32 %v105, 1e-05
    %v108 = vrsqrt.pop %v107
    %v109 = vmul.f32 %v108, %v107
    %v110 = vmul.f32 %v109, %v108
    %v111 = vmul.f32 0.5, %v110
    %v112 = vsub.f32 1.5, %v111
    %v113 = vmul.f32 %v108, %v112
    %vm114 = vweird.f32 %v107
    %vm115 = vweird.f32 %v108
    %vm116 = vmor %vm114, %vm115
    %v117 = vsel %vm116, %v108, %v113
    %v118 = vmul.f32 %v106, %v117
    %v119 = vld [vmem:[#allocation7 + $0x9] sm:$0x1]
    %v120 = vmul.f32 %v102, %v118
    %v121 = vsub.f32 %v119, %v120
    %v122 = vperm.slane %v118, 0
    %v123 = vmul.f32 %v87, %v122
    %v124 = vperm.slane %v121, 0
    %v125 = vadd.f32 %v123, %v124
    %vm126 = vcmp.gt.f32.partialorder %v125, 0.0
    %v127 = vmul.f32 %v125, 0.2
    %v128 = vsel %vm126, %v125, %v127
    %v129 = vld [vmem:[#allocation5 + $0x10] sm:$0xff]
    %v130 = vld [vmem:[#allocation5 + $0x18] sm:$0xff]
    %v131 = vld [vmem:[#allocation5 + $0x20] sm:$0xff]
    %v132 = vld [vmem:[#allocation5 + $0x28] sm:$0xff]
    %v133 = vld [vmem:[#allocation5 + $0x30] sm:$0xff]
    %v134 = vld [vmem:[#allocation5 + $0x38] sm:$0xff]
    %v135 = vld [vmem:[#allocation5 + $0x40] sm:$0xff]
    %v136 = vld [vmem:[#allocation5 + $0x48] sm:$0xff]
    %v137 = vld [vmem:[#allocation5 + $0x50] sm:$0xff]
    %v138 = vld [vmem:[#allocation5 + $0x58] sm:$0xff]
    %v139 = vld [vmem:[#allocation5 + $0x60] sm:$0xff]
    %v140 = vld [vmem:[#allocation5 + $0x68] sm:$0xff]
    %v141 = vld [vmem:[#allocation5 + $0x70] sm:$0xff]
    %v142 = vld [vmem:[#allocation5 + $0x78] sm:$0xff]
    %v143 = vld [vmem:[#allocation5 + $0x80] sm:$0xff]
    %v144 = vld [vmem:[#allocation5 + $0x88] sm:$0xff]
    %v145 = vld [vmem:[#allocation7 + $0x1] sm:$0x1]
    %v146 = vperm.slane %v145, 0
    %147 = vmatpush.msra.mxu0 %v144
    %148 = vmatpush.msra.mxu0 %v143
    %149 = vmatpush.msra.mxu0 %v142
    %150 = vmatpush.msra.mxu0 %v141
    %151 = vmatpush.msra.mxu0 %v140
    %152 = vmatpush.msra.mxu0 %v139
    %153 = vmatpush.msra.mxu0 %v138
    %154 = vmatpush.msra.mxu0 %v137
    %155 = vmatpush.msra.mxu0 %v136
    %156 = vmatpush.msra.mxu0 %v135
    %157 = vmatpush.msra.mxu0 %v134
    %158 = vmatpush.msra.mxu0 %v133
    %159 = vmatpush.msra.mxu0 %v132
    %160 = vmatpush.msra.mxu0 %v131
    %161 = vmatpush.msra.mxu0 %v130
    %162 = vmatpush.msra.mxu0 %v129
    %163 = vmatmul.f32.gmra.mxu0 %v128
    %v164 = vpop.f32.mrf.mxu0
    %v165 = vadd.f32 %v146, %v164
    %166 = vdwg.mxu0
    %v167 = vrot.slane %v165, 4
    %v168 = vadd.f32 %v165, %v167
    %v169 = vrot.slane %v168, 2
    %v170 = vadd.f32 %v168, %v169
    %v171 = vrot.slane %v170, 1
    %v172 = vadd.f32 %v170, %v171
    %v173 = vmul.f32 %v165, %v165
    %v174 = vrot.slane %v173, 4
    %v175 = vadd.f32 %v173, %v174
    %v176 = vrot.slane %v175, 2
    %v177 = vadd.f32 %v175, %v176
    %v178 = vrot.slane %v177, 1
    %v179 = vadd.f32 %v177, %v178
    %v180 = vmul.f32 %v172, 0.125
    %v181 = vmul.f32 %v179, 0.125
    %v182 = vmul.f32 %v180, %v180
    %v183 = vsub.f32 %v181, %v182
    %v184 = vld [vmem:[#allocation7 + $0x6] sm:$0x1]
    %v185 = vadd.f32 %v183, 1e-05
    %v186 = vrsqrt.pop %v185
    %v187 = vmul.f32 %v186, %v185
    %v188 = vmul.f32 %v187, %v186
    %v189 = vmul.f32 0.5, %v188
    %v190 = vsub.f32 1.5, %v189
    %v191 = vmul.f32 %v186, %v190
    %vm192 = vweird.f32 %v185
    %vm193 = vweird.f32 %v186
    %vm194 = vmor %vm192, %vm193
    %v195 = vsel %vm194, %v186, %v191
    %v196 = vmul.f32 %v184, %v195
    %v197 = vld [vmem:[#allocation7 + $0xa] sm:$0x1]
    %v198 = vmul.f32 %v180, %v196
    %v199 = vsub.f32 %v197, %v198
    %v200 = vperm.slane %v196, 0
    %v201 = vmul.f32 %v165, %v200
    %v202 = vperm.slane %v199, 0
    %v203 = vadd.f32 %v201, %v202
    %vm204 = vcmp.gt.f32.partialorder %v203, 0.0
    %v205 = vmul.f32 %v203, 0.2
    %v206 = vsel %vm204, %v203, %v205
    %v207 = vld [vmem:[#allocation5 + $0x90] sm:$0xff]
    %v208 = vld [vmem:[#allocation5 + $0x98] sm:$0xff]
    %v209 = vld [vmem:[#allocation5 + $0xa0] sm:$0xff]
    %v210 = vld [vmem:[#allocation5 + $0xa8] sm:$0xff]
    %v211 = vld [vmem:[#allocation5 + $0xb0] sm:$0xff]
    %v212 = vld [vmem:[#allocation5 + $0xb8] sm:$0xff]
    %v213 = vld [vmem:[#allocation5 + $0xc0] sm:$0xff]
    %v214 = vld [vmem:[#allocation5 + $0xc8] sm:$0xff]
    %v215 = vld [vmem:[#allocation5 + $0xd0] sm:$0xff]
    %v216 = vld [vmem:[#allocation5 + $0xd8] sm:$0xff]
    %v217 = vld [vmem:[#allocation5 + $0xe0] sm:$0xff]
    %v218 = vld [vmem:[#allocation5 + $0xe8] sm:$0xff]
    %v219 = vld [vmem:[#allocation5 + $0xf0] sm:$0xff]
    %v220 = vld [vmem:[#allocation5 + $0xf8] sm:$0xff]
    %v221 = vld [vmem:[#allocation5 + $0x100] sm:$0xff]
    %v222 = vld [vmem:[#allocation5 + $0x108] sm:$0xff]
    %v223 = vld [vmem:[#allocation7 + $0x2] sm:$0x1]
    %v224 = vperm.slane %v223, 0
    %225 = vmatpush.msra.mxu0 %v222
    %226 = vmatpush.msra.mxu0 %v221
    %227 = vmatpush.msra.mxu0 %v220
    %228 = vmatpush.msra.mxu0 %v219
    %229 = vmatpush.msra.mxu0 %v218
    %230 = vmatpush.msra.mxu0 %v217
    %231 = vmatpush.msra.mxu0 %v216
    %232 = vmatpush.msra.mxu0 %v215
    %233 = vmatpush.msra.mxu0 %v214
    %234 = vmatpush.msra.mxu0 %v213
    %235 = vmatpush.msra.mxu0 %v212
    %236 = vmatpush.msra.mxu0 %v211
    %237 = vmatpush.msra.mxu0 %v210
    %238 = vmatpush.msra.mxu0 %v209
    %239 = vmatpush.msra.mxu0 %v208
    %240 = vmatpush.msra.mxu0 %v207
    %241 = vmatmul.f32.gmra.mxu0 %v206
    %v242 = vpop.f32.mrf.mxu0
    %v243 = vadd.f32 %v224, %v242
    %244 = vdwg.mxu0
    %v245 = vrot.slane %v243, 4
    %v246 = vadd.f32 %v243, %v245
    %v247 = vrot.slane %v246, 2
    %v248 = vadd.f32 %v246, %v247
    %v249 = vrot.slane %v248, 1
    %v250 = vadd.f32 %v248, %v249
    %v251 = vmul.f32 %v243, %v243
    %v252 = vrot.slane %v251, 4
    %v253 = vadd.f32 %v251, %v252
    %v254 = vrot.slane %v253, 2
    %v255 = vadd.f32 %v253, %v254
    %v256 = vrot.slane %v255, 1
    %v257 = vadd.f32 %v255, %v256
    %v258 = vmul.f32 %v250, 0.125
    %v259 = vmul.f32 %v257, 0.125
    %v260 = vmul.f32 %v258, %v258
    %v261 = vsub.f32 %v259, %v260
    %v262 = vld [vmem:[#allocation7 + $0x7] sm:$0x1]
    %v263 = vadd.f32 %v261, 1e-05
    %v264 = vrsqrt.pop %v263
    %v265 = vmul.f32 %v264, %v263
    %v266 = vmul.f32 %v265, %v264
    %v267 = vmul.f32 0.5, %v266
    %v268 = vsub.f32 1.5, %v267
    %v269 = vmul.f32 %v264, %v268
    %vm270 = vweird.f32 %v263
    %vm271 = vweird.f32 %v264
    %vm272 = vmor %vm270, %vm271
    %v273 = vsel %vm272, %v264, %v269
    %v274 = vmul.f32 %v262, %v273
    %v275 = vld [vmem:[#allocation7 + $0xb] sm:$0x1]
    %v276 = vmul.f32 %v258, %v274
    %v277 = vsub.f32 %v275, %v276
    %v278 = vperm.slane %v274, 0
    %v279 = vmul.f32 %v243, %v278
    %v280 = vperm.slane %v277, 0
    %v281 = vadd.f32 %v279, %v280
    %vm282 = vcmp.gt.f32.partialorder %v281, 0.0
    %v283 = vmul.f32 %v281, 0.2
    %v284 = vsel %vm282, %v281, %v283
    %v285 = vld [vmem:[#allocation5 + $0x110] sm:$0xff]
    %v286 = vld [vmem:[#allocation5 + $0x118] sm:$0xff]
    %v287 = vld [vmem:[#allocation5 + $0x120] sm:$0xff]
    %v288 = vld [vmem:[#allocation5 + $0x128] sm:$0xff]
    %v289 = vld [vmem:[#allocation5 + $0x130] sm:$0xff]
    %v290 = vld [vmem:[#allocation5 + $0x138] sm:$0xff]
    %v291 = vld [vmem:[#allocation5 + $0x140] sm:$0xff]
    %v292 = vld [vmem:[#allocation5 + $0x148] sm:$0xff]
    %v293 = vld [vmem:[#allocation5 + $0x150] sm:$0xff]
    %v294 = vld [vmem:[#allocation5 + $0x158] sm:$0xff]
    %v295 = vld [vmem:[#allocation5 + $0x160] sm:$0xff]
    %v296 = vld [vmem:[#allocation5 + $0x168] sm:$0xff]
    %v297 = vld [vmem:[#allocation5 + $0x170] sm:$0xff]
    %v298 = vld [vmem:[#allocation5 + $0x178] sm:$0xff]
    %v299 = vld [vmem:[#allocation5 + $0x180] sm:$0xff]
    %v300 = vld [vmem:[#allocation5 + $0x188] sm:$0xff]
    %v301 = vld [vmem:[#allocation7 + $0x3] sm:$0x1]
    %v302 = vperm.slane %v301, 0
    %303 = vmatpush.msra.mxu0 %v300
    %304 = vmatpush.msra.mxu0 %v299
    %305 = vmatpush.msra.mxu0 %v298
    %306 = vmatpush.msra.mxu0 %v297
    %307 = vmatpush.msra.mxu0 %v296
    %308 = vmatpush.msra.mxu0 %v295
    %309 = vmatpush.msra.mxu0 %v294
    %310 = vmatpush.msra.mxu0 %v293
    %311 = vmatpush.msra.mxu0 %v292
    %312 = vmatpush.msra.mxu0 %v291
    %313 = vmatpush.msra.mxu0 %v290
    %314 = vmatpush.msra.mxu0 %v289
    %315 = vmatpush.msra.mxu0 %v288
    %316 = vmatpush.msra.mxu0 %v287
    %317 = vmatpush.msra.mxu0 %v286
    %318 = vmatpush.msra.mxu0 %v285
    %319 = vmatmul.f32.gmra.mxu0 %v284
    %v320 = vpop.f32.mrf.mxu0
    %v321 = vadd.f32 %v302, %v320
    %322 = vdwg.mxu0
    %v323 = vrot.slane %v321, 4
    %v324 = vadd.f32 %v321, %v323
    %v325 = vrot.slane %v324, 2
    %v326 = vadd.f32 %v324, %v325
    %v327 = vrot.slane %v326, 1
    %v328 = vadd.f32 %v326, %v327
    %v329 = vmul.f32 %v321, %v321
    %v330 = vrot.slane %v329, 4
    %v331 = vadd.f32 %v329, %v330
    %v332 = vrot.slane %v331, 2
    %v333 = vadd.f32 %v331, %v332
    %v334 = vrot.slane %v333, 1
    %v335 = vadd.f32 %v333, %v334
    %v336 = vmul.f32 %v328, 0.125
    %v337 = vmul.f32 %v335, 0.125
    %v338 = vmul.f32 %v336, %v336
    %v339 = vsub.f32 %v337, %v338
    %v340 = vld [vmem:[#allocation7 + $0x8] sm:$0x1]
    %v341 = vadd.f32 %v339, 1e-05
    %v342 = vrsqrt.pop %v341
    %v343 = vmul.f32 %v342, %v341
    %v344 = vmul.f32 %v343, %v342
    %v345 = vmul.f32 0.5, %v344
    %v346 = vsub.f32 1.5, %v345
    %v347 = vmul.f32 %v342, %v346
    %vm348 = vweird.f32 %v341
    %vm349 = vweird.f32 %v342
    %vm350 = vmor %vm348, %vm349
    %v351 = vsel %vm350, %v342, %v347
    %v352 = vmul.f32 %v340, %v351
    %v353 = vld [vmem:[#allocation7 + $0xc] sm:$0x1]
    %v354 = vmul.f32 %v336, %v352
    %v355 = vsub.f32 %v353, %v354
    %v356 = vperm.slane %v352, 0
    %v357 = vmul.f32 %v321, %v356
    %v358 = vperm.slane %v355, 0
    %v359 = vadd.f32 %v357, %v358
    %vm360 = vcmp.gt.f32.partialorder %v359, 0.0
    %v361 = vmul.f32 %v359, 0.2
    %v362 = vsel %vm360, %v359, %v361
    %v363 = vld [vmem:[#allocation5 + $0x190] sm:$0xff]
    %v364 = vld [vmem:[#allocation5 + $0x198] sm:$0xff]
    %v365 = vld [vmem:[#allocation5 + $0x1a0] sm:$0xff]
    %v366 = vld [vmem:[#allocation5 + $0x1a8] sm:$0xff]
    %v367 = vld [vmem:[#allocation5 + $0x1b0] sm:$0xff]
    %v368 = vld [vmem:[#allocation5 + $0x1b8] sm:$0xff]
    %v369 = vld [vmem:[#allocation5 + $0x1c0] sm:$0xff]
    %v370 = vld [vmem:[#allocation5 + $0x1c8] sm:$0xff]
    %v371 = vld [vmem:[#allocation5 + $0x1d0] sm:$0xff]
    %v372 = vld [vmem:[#allocation5 + $0x1d8] sm:$0xff]
    %v373 = vld [vmem:[#allocation5 + $0x1e0] sm:$0xff]
    %v374 = vld [vmem:[#allocation5 + $0x1e8] sm:$0xff]
    %v375 = vld [vmem:[#allocation5 + $0x1f0] sm:$0xff]
    %v376 = vld [vmem:[#allocation5 + $0x1f8] sm:$0xff]
    %v377 = vld [vmem:[#allocation5 + $0x200] sm:$0xff]
    %v378 = vld [vmem:[#allocation5 + $0x208] sm:$0xff]
    %v379 = vld [vmem:[#allocation7 + $0x4] sm:$0x1]
    %v380 = vperm.slane %v379, 0
    %381 = vmatpush.msra.mxu0 %v378
    %382 = vmatpush.msra.mxu0 %v377
    %383 = vmatpush.msra.mxu0 %v376
    %384 = vmatpush.msra.mxu0 %v375
    %385 = vmatpush.msra.mxu0 %v374
    %386 = vmatpush.msra.mxu0 %v373
    %387 = vmatpush.msra.mxu0 %v372
    %388 = vmatpush.msra.mxu0 %v371
    %389 = vmatpush.msra.mxu0 %v370
    %390 = vmatpush.msra.mxu0 %v369
    %391 = vmatpush.msra.mxu0 %v368
    %392 = vmatpush.msra.mxu0 %v367
    %393 = vmatpush.msra.mxu0 %v366
    %394 = vmatpush.msra.mxu0 %v365
    %395 = vmatpush.msra.mxu0 %v364
    %396 = vmatpush.msra.mxu0 %v363
    %397 = vmatmul.f32.gmra.mxu0 %v362
    %v398 = vpop.f32.mrf.mxu0
    %v399 = vadd.f32 %v380, %v398
    %400 = vdwg.mxu0
    %401 = vst [vmem:[#allocation8] sm:$0xff] %v399
    // Predicated region
    $region26: #{tpu_custom_call.1} parent=1 // pred_check
      _
    $region27: #{tpu_custom_call.1} parent=1 // pred_check_branch
      %403 = sbr.rel (0) target = $region29
    $region28: #{tpu_custom_call.1} parent=1 // pred_region
      %405 = vsyncadd [#allocation4], 0
      %s407 = sshll.u32 [#allocation8], 4
      %s408 = int_to_ptr.vmem [resolvable:$true] %s407
      %s409 = sshll.u32 %s3, 4
      %s410 = int_to_ptr.hbm [resolvable:$true] %s409
      %412 = dma.vmem_to_hbm [thread:$0]  %s408, 128, %s410, [#allocation4]
    $region29: #{tpu_custom_call.1} parent=1 // pred_fallthru
      _
    // Predicated region
    $region30: #{tpu_custom_call.1} parent=1 // pred_check
      _
    $region31: #{tpu_custom_call.1} parent=1 // pred_check_branch
      %414 = sbr.rel (0) target = $region33
    $region32: #{tpu_custom_call.1} parent=1 // pred_region
      %416 = dma.done [#allocation4], 128
    $region33: #{tpu_custom_call.1} parent=1 // pred_fallthru
      _
    %417 = vsyncpa [#allocation3], 1
    %418 = vsyncpa [#allocation6], 1
    %419 = vsyncpa [#allocation4], 1

</llo_original>
